<compile_context>
chip_gen: v5e
topology: v5e:2x2
jax: 0.10.0
libtpu: 0.0.40
codegen_flags: <defaults>
</compile_context>

<pallas_src>
import functools

import jax
import jax.numpy as jnp
from jax.experimental import pallas as pl
from jax.experimental.pallas import tpu as pltpu


def _softplus(x):
    # Numerically stable softplus (matches F.softplus up to its linear cutoff).
    return jnp.maximum(x, 0.0) + jnp.log1p(jnp.exp(-jnp.abs(x)))


def evidential_head_kernel(x_ref, wb1_ref, wb2_ref, out_ref, *, hidden, mid, num_obj):
    # Packed params: wb1 = [w1; b1] of shape (hidden+1, mid),
    #                wb2 = [w2p; b2p] of shape (mid+1, 4*num_obj)  (columns
    #                pre-permuted to [gamma | nu | alpha | beta] blocks).
    w1 = wb1_ref[:hidden, :]
    b1 = wb1_ref[hidden:hidden + 1, :]
    w2 = wb2_ref[:mid, :]
    b2 = wb2_ref[mid:mid + 1, :]

    # Layer 1 (MXU, f32 accumulate) + ReLU.
    h = jnp.dot(x_ref[...], w1, preferred_element_type=jnp.float32) + b1
    h = jnp.maximum(h, 0.0)

    # Layer 2: evidence (tiny N; still cheapest as a single fused dot here).
    ev = jnp.dot(h, w2, preferred_element_type=jnp.float32) + b2

    # Single softplus pass over all 4*num_obj evidence columns.
    sp = _softplus(ev)
    gamma = sp[:, 0 * num_obj:1 * num_obj]
    nu = sp[:, 1 * num_obj:2 * num_obj] + 1.0
    alpha = sp[:, 2 * num_obj:3 * num_obj] + 1.0
    beta = sp[:, 3 * num_obj:4 * num_obj]

    mean = gamma
    aleatoric = beta / (alpha - 1.0)
    epistemic = beta / ((alpha - 1.0) * nu)

    # Single lane-packed output: [mean | epistemic | aleatoric].
    out_ref[...] = jnp.concatenate([mean, epistemic, aleatoric], axis=-1).astype(out_ref.dtype)


def evidential_reward_head(x, w1, b1, w2, b2, *, num_objectives=1, block_b=256):
    """x: (B, H). w1: (H, H//2), b1: (H//2,), w2: (H//2, 4*num_obj), b2: (4*num_obj,).

    Weights are stored (in_features, out_features), i.e. PyTorch Linear weight
    transposed, so the kernel does plain x @ W (no in-kernel transpose).
    Returns (mean, epistemic_uncertainty, aleatoric_uncertainty), each (B, num_obj).
    """
    B, H = x.shape
    mid = w1.shape[1]
    n4 = 4 * num_objectives

    # Permute layer-2 columns: original column o*4+c  ->  packed column c*num_obj+o,
    # so evidence arrives in the kernel as contiguous [gamma|nu|alpha|beta] blocks.
    w2p = w2.reshape(mid, num_objectives, 4).transpose(0, 2, 1).reshape(mid, n4)
    b2p = b2.reshape(num_objectives, 4).T.reshape(1, n4)

    # Pack weight + bias into one slab per layer (fewer DMA descriptors).
    wb1 = jnp.concatenate([w1, b1.reshape(1, mid)], axis=0)        # (H+1, mid)
    wb2 = jnp.concatenate([w2p, b2p], axis=0)                      # (mid+1, 4*num_obj)

    # Batch tiling: whole batch if small, else multiples of 8 rows (f32 sublane).
    if B <= block_b:
        tb = B
    else:
        tb = max(8, (min(block_b, B) // 8) * 8)
    grid = (pl.cdiv(B, tb),)

    kernel = functools.partial(
        evidential_head_kernel, hidden=H, mid=mid, num_obj=num_objectives)

    out = pl.pallas_call(
        kernel,
        out_shape=jax.ShapeDtypeStruct((B, 3 * num_objectives), jnp.float32),
        grid_spec=pltpu.PrefetchScalarGridSpec(
            num_scalar_prefetch=0,
            grid=grid,
            in_specs=[
                pl.BlockSpec((tb, H), lambda i: (i, 0)),            # x tile streams
                pl.BlockSpec((H + 1, mid), lambda i: (0, 0)),       # weights resident
                pl.BlockSpec((mid + 1, n4), lambda i: (0, 0)),      # weights resident
            ],
            out_specs=pl.BlockSpec((tb, 3 * num_objectives), lambda i: (i, 0)),
        ),
        compiler_params=pltpu.CompilerParams(
            dimension_semantics=("parallel",)),                     # megacore on v7x
    )(x, wb1, wb2)

    mean = out[:, 0 * num_objectives:1 * num_objectives]
    epistemic = out[:, 1 * num_objectives:2 * num_objectives]
    aleatoric = out[:, 2 * num_objectives:3 * num_objectives]
    return mean, epistemic, aleatoric


def _reference(x, w1, b1, w2, b2, num_objectives):
    """Pure-JAX reference mirroring the PyTorch module exactly."""
    h = jnp.maximum(x @ w1 + b1, 0.0)
    ev = (h @ w2 + b2).reshape(-1, num_objectives, 4)
    gamma, nu, alpha, beta = ev[..., 0], ev[..., 1], ev[..., 2], ev[..., 3]
    sp = jax.nn.softplus
    gamma = sp(gamma)
    nu = sp(nu) + 1.0
    alpha = sp(alpha) + 1.0
    beta = sp(beta)
    mean = gamma
    aleatoric = beta / (alpha - 1.0)
    epistemic = beta / ((alpha - 1.0) * nu)
    return mean, epistemic, aleatoric


if __name__ == "__main__":
    batch = 2
    hidden = 32
    num_objectives = 1
    mid = hidden // 2

    key = jax.random.PRNGKey(0)
    k = jax.random.split(key, 5)
    # nn.Linear-style init, weights stored transposed: (in_features, out_features).
    w1 = (jax.random.uniform(k[0], (hidden, mid), jnp.float32) - 0.5) * (2.0 / jnp.sqrt(hidden))
    b1 = (jax.random.uniform(k[1], (mid,), jnp.float32) - 0.5) * (2.0 / jnp.sqrt(hidden))
    w2 = (jax.random.uniform(k[2], (mid, 4 * num_objectives), jnp.float32) - 0.5) * (2.0 / jnp.sqrt(mid))
    b2 = (jax.random.uniform(k[3], (4 * num_objectives,), jnp.float32) - 0.5) * (2.0 / jnp.sqrt(mid))
    x = jax.random.normal(k[4], (batch, hidden), jnp.float32)

    mean, epi, alea = evidential_reward_head(x, w1, b1, w2, b2, num_objectives=num_objectives)
    jax.block_until_ready((mean, epi, alea))

    r_mean, r_epi, r_alea = _reference(x, w1, b1, w2, b2, num_objectives)
    assert mean.shape == (batch, num_objectives)
    assert epi.shape == (batch, num_objectives)
    assert alea.shape == (batch, num_objectives)
    assert jnp.allclose(mean, r_mean, rtol=1e-5, atol=1e-5)
    assert jnp.allclose(epi, r_epi, rtol=1e-5, atol=1e-5)
    assert jnp.allclose(alea, r_alea, rtol=1e-5, atol=1e-5)

    # Also exercise the batch-tiled grid path (grid=(2,), weights VMEM-resident).
    xb = jax.random.normal(jax.random.PRNGKey(1), (64, hidden), jnp.float32)
    m2, e2, a2 = evidential_reward_head(
        xb, w1, b1, w2, b2, num_objectives=num_objectives, block_b=32)
    jax.block_until_ready((m2, e2, a2))
    rm2, re2, ra2 = _reference(xb, w1, b1, w2, b2, num_objectives)
    assert jnp.allclose(m2, rm2, rtol=1e-5, atol=1e-5)
    assert jnp.allclose(e2, re2, rtol=1e-5, atol=1e-5)
    assert jnp.allclose(a2, ra2, rtol=1e-5, atol=1e-5)

    print("KERNEL_OK")
</pallas_src>

<mosaic_0001>
module attributes {stable_mosaic.version = 11 : i64} {
  func.func @evidential_head_kernel(%arg0: i32, %arg1: memref<2x32xf32, #tpu.memory_space<vmem>>, %arg2: memref<33x16xf32, #tpu.memory_space<vmem>>, %arg3: memref<17x4xf32, #tpu.memory_space<vmem>>, %arg4: memref<2x3xf32, #tpu.memory_space<vmem>>) attributes {dimension_semantics = [#tpu.dimension_semantics<parallel>], iteration_bounds = array<i64: 1>, scalar_prefetch = 0 : i64, scratch_operands = 0 : i64, tpu.core_type = #tpu.core_type<tc>, window_params = [{transform_indices = @transform_0, window_bounds = array<i64: 2, 32>}, {pipeline_mode = #tpu.pipeline_mode<synchronous>, transform_indices = @transform_1, window_bounds = array<i64: 33, 16>}, {pipeline_mode = #tpu.pipeline_mode<synchronous>, transform_indices = @transform_2, window_bounds = array<i64: 17, 4>}, {transform_indices = @transform_3, window_bounds = array<i64: 2, 3>}]} {
    %c0 = arith.constant 0 : index
    %c0_0 = arith.constant 0 : index
    %0 = vector.load %arg2[%c0, %c0_0] : memref<33x16xf32, #tpu.memory_space<vmem>>, vector<32x16xf32>
    %c32 = arith.constant 32 : index
    %c0_1 = arith.constant 0 : index
    %1 = vector.load %arg2[%c32, %c0_1] : memref<33x16xf32, #tpu.memory_space<vmem>>, vector<1x16xf32>
    %c0_2 = arith.constant 0 : index
    %c0_3 = arith.constant 0 : index
    %2 = vector.load %arg3[%c0_2, %c0_3] : memref<17x4xf32, #tpu.memory_space<vmem>>, vector<16x4xf32>
    %c16 = arith.constant 16 : index
    %c0_4 = arith.constant 0 : index
    %3 = vector.load %arg3[%c16, %c0_4] : memref<17x4xf32, #tpu.memory_space<vmem>>, vector<1x4xf32>
    %c0_5 = arith.constant 0 : index
    %c0_6 = arith.constant 0 : index
    %4 = vector.load %arg1[%c0_5, %c0_6] : memref<2x32xf32, #tpu.memory_space<vmem>>, vector<2x32xf32>
    %cst = arith.constant dense<0.000000e+00> : vector<2x16xf32>
    %5 = tpu.matmul %4, %0, %cst {dimension_numbers = #tpu.dot_dimension_numbers<[1], [0], [0], [1], [0, 0, 1, 1], [], []>} : vector<2x32xf32>, vector<32x16xf32>, vector<2x16xf32> -> vector<2x16xf32>
    %6 = vector.broadcast %1 : vector<1x16xf32> to vector<2x16xf32>
    %7 = arith.addf %5, %6 : vector<2x16xf32>
    %cst_7 = arith.constant 0.000000e+00 : f32
    %8 = vector.broadcast %cst_7 : f32 to vector<2x16xf32>
    %9 = arith.maximumf %7, %8 : vector<2x16xf32>
    %cst_8 = arith.constant dense<0.000000e+00> : vector<2x4xf32>
    %10 = tpu.matmul %9, %2, %cst_8 {dimension_numbers = #tpu.dot_dimension_numbers<[1], [0], [0], [1], [0, 0, 1, 1], [], []>} : vector<2x16xf32>, vector<16x4xf32>, vector<2x4xf32> -> vector<2x4xf32>
    %11 = vector.broadcast %3 : vector<1x4xf32> to vector<2x4xf32>
    %12 = arith.addf %10, %11 : vector<2x4xf32>
    %cst_9 = arith.constant 0.000000e+00 : f32
    %13 = vector.broadcast %cst_9 : f32 to vector<2x4xf32>
    %14 = arith.maximumf %12, %13 : vector<2x4xf32>
    %15 = math.absf %12 : vector<2x4xf32>
    %cst_10 = arith.constant 0.000000e+00 : f32
    %16 = vector.broadcast %cst_10 : f32 to vector<2x4xf32>
    %17 = arith.subf %16, %15 : vector<2x4xf32>
    %18 = math.exp %17 : vector<2x4xf32>
    %19 = math.log1p %18 : vector<2x4xf32>
    %20 = arith.addf %14, %19 : vector<2x4xf32>
    %21 = vector.extract_strided_slice %20 {offsets = [0, 0], sizes = [2, 1], strides = [1, 1]} : vector<2x4xf32> to vector<2x1xf32>
    %22 = vector.extract_strided_slice %20 {offsets = [0, 1], sizes = [2, 1], strides = [1, 1]} : vector<2x4xf32> to vector<2x1xf32>
    %cst_11 = arith.constant 1.000000e+00 : f32
    %23 = vector.broadcast %cst_11 : f32 to vector<2x1xf32>
    %24 = arith.addf %22, %23 : vector<2x1xf32>
    %25 = vector.extract_strided_slice %20 {offsets = [0, 2], sizes = [2, 1], strides = [1, 1]} : vector<2x4xf32> to vector<2x1xf32>
    %cst_12 = arith.constant 1.000000e+00 : f32
    %26 = vector.broadcast %cst_12 : f32 to vector<2x1xf32>
    %27 = arith.addf %25, %26 : vector<2x1xf32>
    %28 = vector.extract_strided_slice %20 {offsets = [0, 3], sizes = [2, 1], strides = [1, 1]} : vector<2x4xf32> to vector<2x1xf32>
    %cst_13 = arith.constant 1.000000e+00 : f32
    %29 = vector.broadcast %cst_13 : f32 to vector<2x1xf32>
    %30 = arith.subf %27, %29 : vector<2x1xf32>
    %31 = arith.divf %28, %30 : vector<2x1xf32>
    %cst_14 = arith.constant 1.000000e+00 : f32
    %32 = vector.broadcast %cst_14 : f32 to vector<2x1xf32>
    %33 = arith.subf %27, %32 : vector<2x1xf32>
    %34 = arith.mulf %33, %24 : vector<2x1xf32>
    %35 = arith.divf %28, %34 : vector<2x1xf32>
    %36 = tpu.concatenate %21, %35, %31 in 1 : vector<2x1xf32>, vector<2x1xf32>, vector<2x1xf32> -> vector<2x3xf32>
    %c0_15 = arith.constant 0 : index
    %c0_16 = arith.constant 0 : index
    %37 = vector.load %arg4[%c0_15, %c0_16] : memref<2x3xf32, #tpu.memory_space<vmem>>, vector<2x3xf32>
    tpu.vector_store %arg4[%c0_15, %c0_16], %36 {strides = array<i32>} : memref<2x3xf32, #tpu.memory_space<vmem>>, vector<2x3xf32>,
    return
  }
  func.func @transform_0(%arg0: i32) -> (i32, i32) {
    %c0_i32 = arith.constant 0 : i32
    %c0_i32_0 = arith.constant 0 : i32
    return %arg0, %c0_i32 : i32, i32
  }
  func.func @transform_1(%arg0: i32) -> (i32, i32) {
    %c0_i32 = arith.constant 0 : i32
    %c0_i32_0 = arith.constant 0 : i32
    %c0_i32_1 = arith.constant 0 : i32
    return %c0_i32, %c0_i32_0 : i32, i32
  }
  func.func @transform_2(%arg0: i32) -> (i32, i32) {
    %c0_i32 = arith.constant 0 : i32
    %c0_i32_0 = arith.constant 0 : i32
    %c0_i32_1 = arith.constant 0 : i32
    return %c0_i32, %c0_i32_0 : i32, i32
  }
  func.func @transform_3(%arg0: i32) -> (i32, i32) {
    %c0_i32 = arith.constant 0 : i32
    %c0_i32_0 = arith.constant 0 : i32
    return %arg0, %c0_i32 : i32, i32
  }
}

</mosaic_0001>

<llo_original>
// kernel: tpu_custom_call.1
$region0: #{tpu_custom_call.1}
  #allocation0 [shape = 'u32[]', space=smem, size = 0x4, offset = 0x4, fixed_abs, tag = 'smem constant byte address 0x4 - core index']
  #allocation1 [shape = 'u32[72,128]{1,0:T(1,128)}', space=vmem, size = 0x9000, scoped, tag = 'internal scratch']
  %s0 = inlined_call_operand.vmem [shape: f32[2,32], index: 0, kind: input, shape index: {}]
  %s1 = inlined_call_operand.vmem [shape: f32[33,16], index: 1, kind: input, shape index: {}]
  %s2 = inlined_call_operand.vmem [shape: f32[17,4], index: 2, kind: input, shape index: {}]
  %s3 = inlined_call_operand.hbm [shape: f32[2,3], index: 3, kind: output, shape index: {}]
  %s4 = sld [smem:[#allocation0]]
  $region22: #{tpu_custom_call.1} parent=0
    _
  %s6 = ssub.s32 1, %s4
  %s7 = scalar_select 0, %s6, %s4
  $region1: #{tpu_custom_call.1} parent=0
    #allocation2 [shape = 'u8[1024]{0}', space=vmem, size = 0x400, scoped, tag = 'output window, operand 0, single buffered']
    #allocation3 [shape = 's32[1]{0}', space=sflag, size = 0x4, scoped, tag = 'scoped memory for tpu_custom_call.1']
    %8 = vsyncpa [#allocation3], 0
    // Predicated region
    $region2: #{tpu_custom_call.1} parent=1 // pred_check
      _
    $region3: #{tpu_custom_call.1} parent=1 // pred_check_branch
      %10 = sbr.rel (0) target = $region5
    $region4: #{tpu_custom_call.1} parent=1 // pred_region
      _
    $region5: #{tpu_custom_call.1} parent=1 // pred_fallthru
      _
    // Predicated region
    $region6: #{tpu_custom_call.1} parent=1 // pred_check
      _
    $region7: #{tpu_custom_call.1} parent=1 // pred_check_branch
      %12 = sbr.rel (0) target = $region9
    $region8: #{tpu_custom_call.1} parent=1 // pred_region
      _
    $region9: #{tpu_custom_call.1} parent=1 // pred_fallthru
      _
    // Predicated region
    $region10: #{tpu_custom_call.1} parent=1 // pred_check
      _
    $region11: #{tpu_custom_call.1} parent=1 // pred_check_branch
      %14 = sbr.rel (0) target = $region13
    $region12: #{tpu_custom_call.1} parent=1 // pred_region
      _
    $region13: #{tpu_custom_call.1} parent=1 // pred_fallthru
      _
    %v15 = vld [vmem:[%s1] sm:$0xff]
    %v16 = vld [vmem:[%s1 + $0x8] sm:$0xff]
    %v17 = vld [vmem:[%s1 + $0x10] sm:$0xff]
    %v18 = vld [vmem:[%s1 + $0x18] sm:$0xff]
    %v19 = vld [vmem:[%s1 + $0x20] sm:$0x1]
    %v20 = vld [vmem:[%s2] sm:$0xff]
    %v21 = vld [vmem:[%s2 + $0x8] sm:$0xff]
    %v22 = vld [vmem:[%s2 + $0x10] sm:$0x1]
    %v23 = vld [vmem:[%s0] sm:$0x3]
    %v24 = vperm.slane %v19, 0
    %vm25 = vcmask 261120
    %v27 = vsel %vm25, %v23, 0
    %29 = vmatpush.msra.mxu0 0.0
    %30 = vmatpush.msra.mxu0 0.0
    %31 = vmatpush.msra.mxu0 0.0
    %32 = vmatpush.msra.mxu0 0.0
    %33 = vmatpush.msra.mxu0 0.0
    %34 = vmatpush.msra.mxu0 0.0
    %35 = vmatpush.msra.mxu0 0.0
    %36 = vmatpush.msra.mxu0 0.0
    %37 = vmatpush.msra.mxu0 0.0
    %38 = vmatpush.msra.mxu0 0.0
    %39 = vmatpush.msra.mxu0 0.0
    %40 = vmatpush.msra.mxu0 0.0
    %41 = vmatpush.msra.mxu0 %v18
    %42 = vmatpush.msra.mxu0 %v17
    %43 = vmatpush.msra.mxu0 %v16
    %44 = vmatpush.msra.mxu0 %v15
    %45 = vmatmul.f32.gmra.mxu0 %v27
    %v46 = vpop.f32.mrf.mxu0
    %v47 = vadd.f32 %v24, %v46
    %48 = vdwg.mxu0
    %v49 = vmax.f32 %v47, 0.0
    %v50 = vperm.slane %v22, 0
    %vm51 = vcmask 130048
    %v53 = vsel %vm51, %v49, 0
    %55 = vmatpush.msra.mxu0 0.0
    %56 = vmatpush.msra.mxu0 0.0
    %57 = vmatpush.msra.mxu0 0.0
    %58 = vmatpush.msra.mxu0 0.0
    %59 = vmatpush.msra.mxu0 0.0
    %60 = vmatpush.msra.mxu0 0.0
    %61 = vmatpush.msra.mxu0 0.0
    %62 = vmatpush.msra.mxu0 0.0
    %63 = vmatpush.msra.mxu0 0.0
    %64 = vmatpush.msra.mxu0 0.0
    %65 = vmatpush.msra.mxu0 0.0
    %66 = vmatpush.msra.mxu0 0.0
    %67 = vmatpush.msra.mxu0 0.0
    %68 = vmatpush.msra.mxu0 0.0
    %69 = vmatpush.msra.mxu0 %v21
    %70 = vmatpush.msra.mxu0 %v20
    %71 = vmatmul.f32.gmra.mxu0 %v53
    %v72 = vpop.f32.mrf.mxu0
    %v73 = vadd.f32 %v50, %v72
    %74 = vdwg.mxu0
    %v75 = vmax.f32 %v73, 0.0
    %v76 = vand.u32 2147483647, %v73
    %v77 = vsub.f32 0.0, %v76
    %v78 = vmul.f32 %v77, 1.442695
    %v79 = vpow.pop %v78
    %v80 = vadd.f32 %v79, 1.0
    %v81 = vlog2.pop %v80
    %v82 = vmul.f32 %v81, 0.6931472
    %v83 = vmul.f32 -0.5, %v79
    %v84 = vadd.f32 %v83, 1.0
    %v85 = vmul.f32 %v84, %v79
    %v86 = vand.u32 2147483647, %v79
    %vm87 = vcmp.lt.f32.partialorder %v86, 0.0004427343
    %v88 = vsel %vm87, %v85, %v82
    %v89 = vadd.f32 %v75, %v88
    %v90 = vadd.f32 %v89, 1.0
    %v91 = vsub.f32 %v90, 1.0
    %93 = vrot.lane.b32.xlu0 %v91, 1
    %v94 = vpop.permute.xlu0 %93
    %v96 = vrcp.pop %v94
    %v97 = vmul.f32 %v94, %v96
    %v98 = vsub.f32 1.0, %v97
    %v99 = vmul.f32 %v96, %v98
    %v100 = vadd.f32 %v96, %v99
    %vm101 = vweird.f32 %v94
    %vm102 = vweird.f32 %v96
    %vm103 = vmor %vm101, %vm102
    %v104 = vsel %vm103, %v96, %v100
    %v105 = vand.u32 2147483647, %v94
    %vm106 = vcmp.eq.f32.partialorder %v105, 8.507059e+37
    %v107 = vand.u32 %v94, 2147483648
    %v108 = vor.u32 1.1754944e-38, %v107
    %v109 = vsel %vm106, %v108, %v104
    %v110 = vmul.f32 %v89, %v109
    %112 = vrot.lane.b32.xlu0 %v90, 1
    %v113 = vpop.permute.xlu0 %112
    %v115 = vmul.f32 %v91, %v113
    %117 = vrot.lane.b32.xlu0 %v115, 1
    %v118 = vpop.permute.xlu0 %117
    %v120 = vrcp.pop %v118
    %v121 = vmul.f32 %v118, %v120
    %v122 = vsub.f32 1.0, %v121
    %v123 = vmul.f32 %v120, %v122
    %v124 = vadd.f32 %v120, %v123
    %vm125 = vweird.f32 %v118
    %vm126 = vweird.f32 %v120
    %vm127 = vmor %vm125, %vm126
    %v128 = vsel %vm127, %v120, %v124
    %v129 = vand.u32 2147483647, %v118
    %vm130 = vcmp.eq.f32.partialorder %v129, 8.507059e+37
    %v131 = vand.u32 %v118, 2147483648
    %v132 = vor.u32 1.1754944e-38, %v131
    %v133 = vsel %vm130, %v132, %v128
    %v134 = vmul.f32 %v89, %v133
    %136 = vrot.lane.b32.xlu0 %v134, 126
    %v137 = vpop.permute.xlu0 %136
    %140 = vrot.lane.b32.xlu0 %v110, 127
    %v141 = vpop.permute.xlu0 %140
    %vm143 = vcmask 7168
    %v144 = vsel %vm143, %v89, %v137
    %vm145 = vcmask 15360
    %v146 = vsel %vm145, %v144, %v141
    %vm147 = vcmask 17408
    %148 = vst.msk [vmem:[#allocation2] sm:$0x3] %vm147, %v146
    // Predicated region
    $region14: #{tpu_custom_call.1} parent=1 // pred_check
      _
    $region15: #{tpu_custom_call.1} parent=1 // pred_check_branch
      %150 = sbr.rel (0) target = $region17
    $region16: #{tpu_custom_call.1} parent=1 // pred_region
      %152 = vsyncadd [#allocation3], 0
      %s154 = sshll.u32 [#allocation2], 4
      %s155 = int_to_ptr.vmem [resolvable:$true] %s154
      %s156 = sshll.u32 %s3, 4
      %s157 = int_to_ptr.hbm [resolvable:$true] %s156
      %159 = dma.vmem_to_hbm [thread:$0]  %s155, 32, %s157, [#allocation3]
    $region17: #{tpu_custom_call.1} parent=1 // pred_fallthru
      _
    // Predicated region
    $region18: #{tpu_custom_call.1} parent=1 // pred_check
      _
    $region19: #{tpu_custom_call.1} parent=1 // pred_check_branch
      %161 = sbr.rel (0) target = $region21
    $region20: #{tpu_custom_call.1} parent=1 // pred_region
      %163 = dma.done [#allocation3], 32
    $region21: #{tpu_custom_call.1} parent=1 // pred_fallthru
      _
    %164 = vsyncpa [#allocation3], 1

</llo_original>
